<compile_context>
chip_gen: v5e
topology: v5e:2x2
jax: 0.10.0
libtpu: 0.0.40
codegen_flags: <defaults>
</compile_context>

<pallas_src>
import jax
import jax.numpy as jnp
from jax import lax
from jax.experimental import pallas as pl
from jax.experimental.pallas import tpu as pltpu

LANE = 128  # TPU lane width


def _round_up(x, m):
    return ((x + m - 1) // m) * m


def giraffe_kernel(xg_ref, xp_ref, xs_ref, wg_ref, wp_ref, ws_ref,
                   b_ref, wf_ref, bf_ref, out_ref):
    # Fused hidden layer: the three branch Linears share one f32 accumulator.
    # Each weight is column-padded into its own hidden slice, so summing the
    # three matmuls equals the block-diagonal fused matmul (no in-kernel
    # concatenation, no wrapper-side concat/pad HBM pass).
    h = jnp.dot(xg_ref[...], wg_ref[...], preferred_element_type=jnp.float32)
    h = h + jnp.dot(xp_ref[...], wp_ref[...], preferred_element_type=jnp.float32)
    h = h + jnp.dot(xs_ref[...], ws_ref[...], preferred_element_type=jnp.float32)
    h = jnp.maximum(h + b_ref[...], 0.0)            # (tm, n_pad), ReLU

    wf = wf_ref[...]                                # (1, n_pad), VMEM-resident
    bf = bf_ref[0, 0]                               # scalar from SMEM

    # Final Linear(n_pad -> 1) + tanh, lane-dense packed output:
    # per 128-row chunk, (1, n_pad) x (128, n_pad)^T -> (1, 128) on the MXU
    # puts the per-row scalars on lanes; the chunk is stored at leading index r
    # of the (R, 1, 128) output block (unmasked store, 4 B/row writeback).
    for r in range(out_ref.shape[0]):               # static unroll, R small
        hr = h[r * LANE:(r + 1) * LANE, :]          # (128, n_pad), aligned slice
        z = lax.dot_general(wf, hr, (((1,), (1,)), ((), ())),
                            preferred_element_type=jnp.float32)  # (1, 128)
        out_ref[r] = jnp.tanh(z + bf)


def _choose_tiles(batch, block_rows):
    """Pick R = rows-of-128 per grid step: minimal batch padding, >= 2 grid
    steps when possible (v7x megacore), tiles of ~block_rows rows."""
    n128 = pl.cdiv(batch, LANE)                     # 128-row groups needed
    r_cap = max(1, min(block_rows // LANE, n128))
    if n128 >= 2:
        r_cap = min(r_cap, max(1, n128 // 2))       # keep >= 2 grid steps
    r = 1
    for d in range(r_cap, 0, -1):                   # prefer a divisor: no extra pad
        if n128 % d == 0:
            r = d
            break
    if 2 * r < r_cap:                               # only tiny divisors -> pad a bit
        r = r_cap
    n_steps = pl.cdiv(n128, r)
    return r, n_steps, n_steps * r * LANE


def giraffe_forward(xg, xp, xs, packed, *, block_rows=2048):
    """Pallas wrapper: tile the batch, stream activations, packed lane output."""
    wg_p, wp_p, ws_p, b_p, wf_row, bf = packed
    batch = xg.shape[0]
    r, n_steps, b_pad = _choose_tiles(batch, block_rows)
    tm = r * LANE

    def pad_batch(a):
        a = a.astype(jnp.float32)
        if b_pad == batch:
            return a                                # common case: no extra HBM pass
        return jnp.pad(a, ((0, b_pad - batch), (0, 0)))

    xg_p, xp_p, xs_p = pad_batch(xg), pad_batch(xp), pad_batch(xs)

    out = pl.pallas_call(
        giraffe_kernel,
        out_shape=jax.ShapeDtypeStruct((n_steps * r, 1, LANE), jnp.float32),
        grid=(n_steps,),
        in_specs=[
            # streamed activation tiles (full feature dims: no K pad, no concat)
            pl.BlockSpec((tm, xg_p.shape[1]), lambda i: (i, 0)),
            pl.BlockSpec((tm, xp_p.shape[1]), lambda i: (i, 0)),
            pl.BlockSpec((tm, xs_p.shape[1]), lambda i: (i, 0)),
            # VMEM-resident weights / biases (constant index maps -> no re-DMA)
            pl.BlockSpec(wg_p.shape, lambda i: (0, 0)),
            pl.BlockSpec(wp_p.shape, lambda i: (0, 0)),
            pl.BlockSpec(ws_p.shape, lambda i: (0, 0)),
            pl.BlockSpec(b_p.shape, lambda i: (0, 0)),
            pl.BlockSpec(wf_row.shape, lambda i: (0, 0)),
            # scalar final bias in SMEM
            pl.BlockSpec(memory_space=pltpu.MemorySpace.SMEM),
        ],
        out_specs=pl.BlockSpec((r, 1, LANE), lambda i: (i, 0, 0)),
        compiler_params=pltpu.CompilerParams(
            dimension_semantics=("parallel",)),
    )(xg_p, xp_p, xs_p, wg_p, wp_p, ws_p, b_p, wf_row, bf)

    # out holds one scalar per padded batch row, lane-dense; un-pad and reshape.
    return out.reshape(-1)[:batch].reshape(batch, 1)


def init_params(key, xg_size, xp_size, xs_size):
    """Deterministic init matching nn.Linear shapes (weights stored [in, out])."""
    ks = jax.random.split(key, 8)
    hg, hp, hs = 2 * xg_size, 2 * xp_size, 2 * xs_size

    def uinit(k, shape, fan_in):
        bound = 1.0 / jnp.sqrt(fan_in)
        return jax.random.uniform(k, shape, jnp.float32, -bound, bound)

    wg = uinit(ks[0], (xg_size, hg), xg_size)
    bg = uinit(ks[1], (1, hg), xg_size)
    wp = uinit(ks[2], (xp_size, hp), xp_size)
    bp = uinit(ks[3], (1, hp), xp_size)
    ws = uinit(ks[4], (xs_size, hs), xs_size)
    bs = uinit(ks[5], (1, hs), xs_size)
    fin = hg + hp + hs
    wf = uinit(ks[6], (fin, 1), fin)
    bf = uinit(ks[7], (1, 1), fin)
    return (wg, bg, wp, bp, ws, bs, wf, bf)


def pack_params(params):
    """Column-pad each branch weight into its hidden slice of a lane-aligned
    (in, n_pad) matrix; fuse biases; final weight as a padded row vector."""
    wg, bg, wp, bp, ws, bs, wf, bf = params
    hg, hp_, hs = wg.shape[1], wp.shape[1], ws.shape[1]
    n = hg + hp_ + hs
    n_pad = _round_up(n, LANE)

    wg_p = jnp.zeros((wg.shape[0], n_pad), jnp.float32).at[:, :hg].set(wg)
    wp_p = jnp.zeros((wp.shape[0], n_pad), jnp.float32).at[:, hg:hg + hp_].set(wp)
    ws_p = jnp.zeros((ws.shape[0], n_pad), jnp.float32).at[:, hg + hp_:n].set(ws)

    b_p = jnp.zeros((1, n_pad), jnp.float32)
    b_p = b_p.at[:, :hg].set(bg).at[:, hg:hg + hp_].set(bp).at[:, hg + hp_:n].set(bs)

    wf_row = jnp.zeros((1, n_pad), jnp.float32).at[:, :n].set(wf.T)
    bf2 = bf.reshape(1, 1).astype(jnp.float32)
    return (wg_p, wp_p, ws_p, b_p, wf_row, bf2)


def giraffe_ref(xg, xp, xs, params):
    """Pure-JAX reference mirroring the PyTorch forward."""
    wg, bg, wp, bp, ws, bs, wf, bf = params
    hg = jax.nn.relu(xg @ wg + bg)
    hp = jax.nn.relu(xp @ wp + bp)
    hs = jax.nn.relu(xs @ ws + bs)
    h = jnp.concatenate([hg, hp, hs], axis=1)
    return jnp.tanh(h @ wf + bf)


if __name__ == "__main__":
    xg_size, xp_size, xs_size = 24, 40, 32
    batch = 8

    key = jax.random.PRNGKey(0)
    k_xg, k_xp, k_xs, k_params = jax.random.split(key, 4)

    xg = jax.random.normal(k_xg, (batch, xg_size), jnp.float32)
    xp = jax.random.normal(k_xp, (batch, xp_size), jnp.float32)
    xs = jax.random.normal(k_xs, (batch, xs_size), jnp.float32)

    params = init_params(k_params, xg_size, xp_size, xs_size)
    packed = pack_params(params)

    out = giraffe_forward(xg, xp, xs, packed)
    out = jax.block_until_ready(out)

    ref = giraffe_ref(xg, xp, xs, params)
    assert out.shape == (batch, 1), out.shape
    assert jnp.allclose(out, ref, atol=1e-5, rtol=1e-5), (out, ref)

    print("KERNEL_OK")
</pallas_src>

<mosaic_0001>
module attributes {stable_mosaic.version = 11 : i64} {
  func.func @giraffe_kernel(%arg0: i32, %arg1: memref<128x24xf32, #tpu.memory_space<vmem>>, %arg2: memref<128x40xf32, #tpu.memory_space<vmem>>, %arg3: memref<128x32xf32, #tpu.memory_space<vmem>>, %arg4: memref<24x256xf32, #tpu.memory_space<vmem>>, %arg5: memref<40x256xf32, #tpu.memory_space<vmem>>, %arg6: memref<32x256xf32, #tpu.memory_space<vmem>>, %arg7: memref<1x256xf32, #tpu.memory_space<vmem>>, %arg8: memref<1x256xf32, #tpu.memory_space<vmem>>, %arg9: memref<1x1xf32, #tpu.memory_space<smem>>, %arg10: memref<1x1x128xf32, #tpu.memory_space<vmem>>) attributes {dimension_semantics = [#tpu.dimension_semantics<parallel>], iteration_bounds = array<i64: 1>, scalar_prefetch = 0 : i64, scratch_operands = 0 : i64, tpu.core_type = #tpu.core_type<tc>, window_params = [{transform_indices = @transform_0, window_bounds = array<i64: 128, 24>}, {transform_indices = @transform_1, window_bounds = array<i64: 128, 40>}, {transform_indices = @transform_2, window_bounds = array<i64: 128, 32>}, {pipeline_mode = #tpu.pipeline_mode<synchronous>, transform_indices = @transform_3, window_bounds = array<i64: 24, 256>}, {pipeline_mode = #tpu.pipeline_mode<synchronous>, transform_indices = @transform_4, window_bounds = array<i64: 40, 256>}, {pipeline_mode = #tpu.pipeline_mode<synchronous>, transform_indices = @transform_5, window_bounds = array<i64: 32, 256>}, {pipeline_mode = #tpu.pipeline_mode<synchronous>, transform_indices = @transform_6, window_bounds = array<i64: 1, 256>}, {pipeline_mode = #tpu.pipeline_mode<synchronous>, transform_indices = @transform_7, window_bounds = array<i64: 1, 256>}, {transform_indices = @transform_8, window_bounds = array<i64: 1, 1>}, {transform_indices = @transform_9, window_bounds = array<i64: 1, 1, 128>}]} {
    %c0 = arith.constant 0 : index
    %c0_0 = arith.constant 0 : index
    %0 = vector.load %arg1[%c0, %c0_0] : memref<128x24xf32, #tpu.memory_space<vmem>>, vector<128x24xf32>
    %c0_1 = arith.constant 0 : index
    %c0_2 = arith.constant 0 : index
    %1 = vector.load %arg4[%c0_1, %c0_2] : memref<24x256xf32, #tpu.memory_space<vmem>>, vector<24x256xf32>
    %cst = arith.constant dense<0.000000e+00> : vector<128x256xf32>
    %2 = tpu.matmul %0, %1, %cst {dimension_numbers = #tpu.dot_dimension_numbers<[1], [0], [0], [1], [0, 0, 1, 1], [], []>} : vector<128x24xf32>, vector<24x256xf32>, vector<128x256xf32> -> vector<128x256xf32>
    %c0_3 = arith.constant 0 : index
    %c0_4 = arith.constant 0 : index
    %3 = vector.load %arg2[%c0_3, %c0_4] : memref<128x40xf32, #tpu.memory_space<vmem>>, vector<128x40xf32>
    %c0_5 = arith.constant 0 : index
    %c0_6 = arith.constant 0 : index
    %4 = vector.load %arg5[%c0_5, %c0_6] : memref<40x256xf32, #tpu.memory_space<vmem>>, vector<40x256xf32>
    %cst_7 = arith.constant dense<0.000000e+00> : vector<128x256xf32>
    %5 = tpu.matmul %3, %4, %cst_7 {dimension_numbers = #tpu.dot_dimension_numbers<[1], [0], [0], [1], [0, 0, 1, 1], [], []>} : vector<128x40xf32>, vector<40x256xf32>, vector<128x256xf32> -> vector<128x256xf32>
    %6 = arith.addf %2, %5 : vector<128x256xf32>
    %c0_8 = arith.constant 0 : index
    %c0_9 = arith.constant 0 : index
    %7 = vector.load %arg3[%c0_8, %c0_9] : memref<128x32xf32, #tpu.memory_space<vmem>>, vector<128x32xf32>
    %c0_10 = arith.constant 0 : index
    %c0_11 = arith.constant 0 : index
    %8 = vector.load %arg6[%c0_10, %c0_11] : memref<32x256xf32, #tpu.memory_space<vmem>>, vector<32x256xf32>
    %cst_12 = arith.constant dense<0.000000e+00> : vector<128x256xf32>
    %9 = tpu.matmul %7, %8, %cst_12 {dimension_numbers = #tpu.dot_dimension_numbers<[1], [0], [0], [1], [0, 0, 1, 1], [], []>} : vector<128x32xf32>, vector<32x256xf32>, vector<128x256xf32> -> vector<128x256xf32>
    %10 = arith.addf %6, %9 : vector<128x256xf32>
    %c0_13 = arith.constant 0 : index
    %c0_14 = arith.constant 0 : index
    %11 = vector.load %arg7[%c0_13, %c0_14] : memref<1x256xf32, #tpu.memory_space<vmem>>, vector<1x256xf32>
    %12 = vector.broadcast %11 : vector<1x256xf32> to vector<128x256xf32>
    %13 = arith.addf %10, %12 : vector<128x256xf32>
    %cst_15 = arith.constant 0.000000e+00 : f32
    %14 = vector.broadcast %cst_15 : f32 to vector<128x256xf32>
    %15 = arith.maximumf %13, %14 : vector<128x256xf32>
    %c0_16 = arith.constant 0 : index
    %c0_17 = arith.constant 0 : index
    %16 = vector.load %arg8[%c0_16, %c0_17] : memref<1x256xf32, #tpu.memory_space<vmem>>, vector<1x256xf32>
    %c0_18 = arith.constant 0 : index
    %c0_19 = arith.constant 0 : index
    %17 = memref.load %arg9[%c0_18, %c0_19] : memref<1x1xf32, #tpu.memory_space<smem>>
    %cst_20 = arith.constant dense<0.000000e+00> : vector<1x128xf32>
    %18 = tpu.matmul %16, %15, %cst_20 {dimension_numbers = #tpu.dot_dimension_numbers<[1], [1], [0], [0], [0, 0, 1, 0], [], []>} : vector<1x256xf32>, vector<128x256xf32>, vector<1x128xf32> -> vector<1x128xf32>
    %19 = vector.broadcast %17 : f32 to vector<1x128xf32>
    %20 = arith.addf %18, %19 : vector<1x128xf32>
    %21 = math.tanh %20 : vector<1x128xf32>
    %c0_21 = arith.constant 0 : index
    %c0_22 = arith.constant 0 : index
    %c0_23 = arith.constant 0 : index
    %22 = vector.load %arg10[%c0_21, %c0_22, %c0_23] : memref<1x1x128xf32, #tpu.memory_space<vmem>>, vector<1x1x128xf32>
    %23 = vector.shape_cast %22 : vector<1x1x128xf32> to vector<1x128xf32>
    %24 = vector.shape_cast %21 : vector<1x128xf32> to vector<1x1x128xf32>
    tpu.vector_store %arg10[%c0_21, %c0_22, %c0_23], %24 {strides = array<i32>} : memref<1x1x128xf32, #tpu.memory_space<vmem>>, vector<1x1x128xf32>,
    return
  }
  func.func @transform_0(%arg0: i32) -> (i32, i32) {
    %c0_i32 = arith.constant 0 : i32
    %c0_i32_0 = arith.constant 0 : i32
    return %arg0, %c0_i32 : i32, i32
  }
  func.func @transform_1(%arg0: i32) -> (i32, i32) {
    %c0_i32 = arith.constant 0 : i32
    %c0_i32_0 = arith.constant 0 : i32
    return %arg0, %c0_i32 : i32, i32
  }
  func.func @transform_2(%arg0: i32) -> (i32, i32) {
    %c0_i32 = arith.constant 0 : i32
    %c0_i32_0 = arith.constant 0 : i32
    return %arg0, %c0_i32 : i32, i32
  }
  func.func @transform_3(%arg0: i32) -> (i32, i32) {
    %c0_i32 = arith.constant 0 : i32
    %c0_i32_0 = arith.constant 0 : i32
    %c0_i32_1 = arith.constant 0 : i32
    return %c0_i32, %c0_i32_0 : i32, i32
  }
  func.func @transform_4(%arg0: i32) -> (i32, i32) {
    %c0_i32 = arith.constant 0 : i32
    %c0_i32_0 = arith.constant 0 : i32
    %c0_i32_1 = arith.constant 0 : i32
    return %c0_i32, %c0_i32_0 : i32, i32
  }
  func.func @transform_5(%arg0: i32) -> (i32, i32) {
    %c0_i32 = arith.constant 0 : i32
    %c0_i32_0 = arith.constant 0 : i32
    %c0_i32_1 = arith.constant 0 : i32
    return %c0_i32, %c0_i32_0 : i32, i32
  }
  func.func @transform_6(%arg0: i32) -> (i32, i32) {
    %c0_i32 = arith.constant 0 : i32
    %c0_i32_0 = arith.constant 0 : i32
    %c0_i32_1 = arith.constant 0 : i32
    return %c0_i32, %c0_i32_0 : i32, i32
  }
  func.func @transform_7(%arg0: i32) -> (i32, i32) {
    %c0_i32 = arith.constant 0 : i32
    %c0_i32_0 = arith.constant 0 : i32
    %c0_i32_1 = arith.constant 0 : i32
    return %c0_i32, %c0_i32_0 : i32, i32
  }
  func.func @transform_8(%arg0: i32) -> (i32, i32) {
    %c0_i32 = arith.constant 0 : i32
    %c0_i32_0 = arith.constant 0 : i32
    %c0_i32_1 = arith.constant 0 : i32
    return %c0_i32, %c0_i32_0 : i32, i32
  }
  func.func @transform_9(%arg0: i32) -> (i32, i32, i32) {
    %c0_i32 = arith.constant 0 : i32
    %c0_i32_0 = arith.constant 0 : i32
    %c0_i32_1 = arith.constant 0 : i32
    return %arg0, %c0_i32, %c0_i32_0 : i32, i32, i32
  }
}

</mosaic_0001>

<llo_original>
// kernel: tpu_custom_call.1
$region0: #{tpu_custom_call.1}
  #allocation0 [shape = 'u32[]', space=smem, size = 0x4, offset = 0x4, fixed_abs, tag = 'smem constant byte address 0x4 - core index']
  #allocation1 [shape = 'u32[72,128]{1,0:T(1,128)}', space=vmem, size = 0x9000, scoped, tag = 'internal scratch']
  #allocation2 [shape = 'f32[1,1]{1,0:T(1,128)S(6)}', space=smem, size = 0x200, scoped, tag = 'scoped memory for tpu_custom_call.1']
  %s0 = inlined_call_operand.vmem [shape: f32[128,24], index: 0, kind: input, shape index: {}]
  %s1 = inlined_call_operand.vmem [shape: f32[128,40], index: 1, kind: input, shape index: {}]
  %s2 = inlined_call_operand.vmem [shape: f32[128,32], index: 2, kind: input, shape index: {}]
  %s3 = inlined_call_operand.vmem [shape: f32[24,256], index: 3, kind: input, shape index: {}]
  %s4 = inlined_call_operand.vmem [shape: f32[40,256], index: 4, kind: input, shape index: {}]
  %s5 = inlined_call_operand.vmem [shape: f32[32,256], index: 5, kind: input, shape index: {}]
  %s6 = inlined_call_operand.vmem [shape: f32[1,256], index: 6, kind: input, shape index: {}]
  %s7 = inlined_call_operand.vmem [shape: f32[1,256], index: 7, kind: input, shape index: {}]
  %s8 = inlined_call_operand.<no memory space> [shape: f32[1,1], index: 8, kind: input, shape index: {}]
  %s9 = inlined_call_operand.hbm [shape: f32[1,1,128], index: 9, kind: output, shape index: {}]
  %s10 = sld [smem:[#allocation0]]
  $region46: #{tpu_custom_call.1} parent=0
    _
  %s12 = ssub.s32 1, %s10
  %s13 = scalar_select 0, %s12, %s10
  %14 = sst [smem:[#allocation2]] %s8
  $region1: #{tpu_custom_call.1} parent=0
    #allocation3 [shape = 'u8[512]{0}', space=vmem, size = 0x400, scoped, tag = 'output window, operand 0, single buffered']
    #allocation4 [shape = 's32[1]{0}', space=sflag, size = 0x4, scoped, tag = 'scoped memory for tpu_custom_call.1']
    %15 = vsyncpa [#allocation4], 0
    // Predicated region
    $region2: #{tpu_custom_call.1} parent=1 // pred_check
      _
    $region3: #{tpu_custom_call.1} parent=1 // pred_check_branch
      %17 = sbr.rel (0) target = $region5
    $region4: #{tpu_custom_call.1} parent=1 // pred_region
      _
    $region5: #{tpu_custom_call.1} parent=1 // pred_fallthru
      _
    // Predicated region
    $region6: #{tpu_custom_call.1} parent=1 // pred_check
      _
    $region7: #{tpu_custom_call.1} parent=1 // pred_check_branch
      %19 = sbr.rel (0) target = $region9
    $region8: #{tpu_custom_call.1} parent=1 // pred_region
      _
    $region9: #{tpu_custom_call.1} parent=1 // pred_fallthru
      _
    // Predicated region
    $region10: #{tpu_custom_call.1} parent=1 // pred_check
      _
    $region11: #{tpu_custom_call.1} parent=1 // pred_check_branch
      %21 = sbr.rel (0) target = $region13
    $region12: #{tpu_custom_call.1} parent=1 // pred_region
      _
    $region13: #{tpu_custom_call.1} parent=1 // pred_fallthru
      _
    // Predicated region
    $region14: #{tpu_custom_call.1} parent=1 // pred_check
      _
    $region15: #{tpu_custom_call.1} parent=1 // pred_check_branch
      %23 = sbr.rel (0) target = $region17
    $region16: #{tpu_custom_call.1} parent=1 // pred_region
      _
    $region17: #{tpu_custom_call.1} parent=1 // pred_fallthru
      _
    // Predicated region
    $region18: #{tpu_custom_call.1} parent=1 // pred_check
      _
    $region19: #{tpu_custom_call.1} parent=1 // pred_check_branch
      %25 = sbr.rel (0) target = $region21
    $region20: #{tpu_custom_call.1} parent=1 // pred_region
      _
    $region21: #{tpu_custom_call.1} parent=1 // pred_fallthru
      _
    // Predicated region
    $region22: #{tpu_custom_call.1} parent=1 // pred_check
      _
    $region23: #{tpu_custom_call.1} parent=1 // pred_check_branch
      %27 = sbr.rel (0) target = $region25
    $region24: #{tpu_custom_call.1} parent=1 // pred_region
      _
    $region25: #{tpu_custom_call.1} parent=1 // pred_fallthru
      _
    // Predicated region
    $region26: #{tpu_custom_call.1} parent=1 // pred_check
      _
    $region27: #{tpu_custom_call.1} parent=1 // pred_check_branch
      %29 = sbr.rel (0) target = $region29
    $region28: #{tpu_custom_call.1} parent=1 // pred_region
      _
    $region29: #{tpu_custom_call.1} parent=1 // pred_fallthru
      _
    // Predicated region
    $region30: #{tpu_custom_call.1} parent=1 // pred_check
      _
    $region31: #{tpu_custom_call.1} parent=1 // pred_check_branch
      %31 = sbr.rel (0) target = $region33
    $region32: #{tpu_custom_call.1} parent=1 // pred_region
      _
    $region33: #{tpu_custom_call.1} parent=1 // pred_fallthru
      _
    // Predicated region
    $region34: #{tpu_custom_call.1} parent=1 // pred_check
      _
    $region35: #{tpu_custom_call.1} parent=1 // pred_check_branch
      %33 = sbr.rel (0) target = $region37
    $region36: #{tpu_custom_call.1} parent=1 // pred_region
      _
    $region37: #{tpu_custom_call.1} parent=1 // pred_fallthru
      _
    %v34 = vld [vmem:[%s0] sm:$0xff]
    %v35 = vld [vmem:[%s0 + $0x8] sm:$0xff]
    %v36 = vld [vmem:[%s0 + $0x10] sm:$0xff]
    %v37 = vld [vmem:[%s0 + $0x18] sm:$0xff]
    %v38 = vld [vmem:[%s0 + $0x20] sm:$0xff]
    %v39 = vld [vmem:[%s0 + $0x28] sm:$0xff]
    %v40 = vld [vmem:[%s0 + $0x30] sm:$0xff]
    %v41 = vld [vmem:[%s0 + $0x38] sm:$0xff]
    %v42 = vld [vmem:[%s0 + $0x40] sm:$0xff]
    %v43 = vld [vmem:[%s0 + $0x48] sm:$0xff]
    %v44 = vld [vmem:[%s0 + $0x50] sm:$0xff]
    %v45 = vld [vmem:[%s0 + $0x58] sm:$0xff]
    %v46 = vld [vmem:[%s0 + $0x60] sm:$0xff]
    %v47 = vld [vmem:[%s0 + $0x68] sm:$0xff]
    %v48 = vld [vmem:[%s0 + $0x70] sm:$0xff]
    %v49 = vld [vmem:[%s0 + $0x78] sm:$0xff]
    %v50 = vld [vmem:[%s3] sm:$0xff]
    %v51 = vld [vmem:[%s3 + $0x8] sm:$0xff]
    %v52 = vld [vmem:[%s3 + $0x10] sm:$0xff]
    %v53 = vld [vmem:[%s3 + $0x18] sm:$0xff]
    %v54 = vld [vmem:[%s3 + $0x20] sm:$0xff]
    %v55 = vld [vmem:[%s3 + $0x28] sm:$0xff]
    %v56 = vld [vmem:[%s1] sm:$0xff]
    %v57 = vld [vmem:[%s1 + $0x8] sm:$0xff]
    %v58 = vld [vmem:[%s1 + $0x10] sm:$0xff]
    %v59 = vld [vmem:[%s1 + $0x18] sm:$0xff]
    %v60 = vld [vmem:[%s1 + $0x20] sm:$0xff]
    %v61 = vld [vmem:[%s1 + $0x28] sm:$0xff]
    %v62 = vld [vmem:[%s1 + $0x30] sm:$0xff]
    %v63 = vld [vmem:[%s1 + $0x38] sm:$0xff]
    %v64 = vld [vmem:[%s1 + $0x40] sm:$0xff]
    %v65 = vld [vmem:[%s1 + $0x48] sm:$0xff]
    %v66 = vld [vmem:[%s1 + $0x50] sm:$0xff]
    %v67 = vld [vmem:[%s1 + $0x58] sm:$0xff]
    %v68 = vld [vmem:[%s1 + $0x60] sm:$0xff]
    %v69 = vld [vmem:[%s1 + $0x68] sm:$0xff]
    %v70 = vld [vmem:[%s1 + $0x70] sm:$0xff]
    %v71 = vld [vmem:[%s1 + $0x78] sm:$0xff]
    %v72 = vld [vmem:[%s4] sm:$0xff]
    %v73 = vld [vmem:[%s4 + $0x8] sm:$0xff]
    %v74 = vld [vmem:[%s4 + $0x10] sm:$0xff]
    %v75 = vld [vmem:[%s4 + $0x18] sm:$0xff]
    %v76 = vld [vmem:[%s4 + $0x20] sm:$0xff]
    %v77 = vld [vmem:[%s4 + $0x28] sm:$0xff]
    %v78 = vld [vmem:[%s4 + $0x30] sm:$0xff]
    %v79 = vld [vmem:[%s4 + $0x38] sm:$0xff]
    %v80 = vld [vmem:[%s4 + $0x40] sm:$0xff]
    %v81 = vld [vmem:[%s4 + $0x48] sm:$0xff]
    %vm82 = vcmask 326656
    %v84 = vsel %vm82, %v56, 0
    %v87 = vsel %vm82, %v57, 0
    %v90 = vsel %vm82, %v58, 0
    %v93 = vsel %vm82, %v59, 0
    %v96 = vsel %vm82, %v60, 0
    %v99 = vsel %vm82, %v61, 0
    %v102 = vsel %vm82, %v62, 0
    %v105 = vsel %vm82, %v63, 0
    %v108 = vsel %vm82, %v64, 0
    %v111 = vsel %vm82, %v65, 0
    %v114 = vsel %vm82, %v66, 0
    %v117 = vsel %vm82, %v67, 0
    %v120 = vsel %vm82, %v68, 0
    %v123 = vsel %vm82, %v69, 0
    %v126 = vsel %vm82, %v70, 0
    %v129 = vsel %vm82, %v71, 0
    %131 = vmatpush.msra.mxu0 0.0
    %132 = vmatpush.msra.mxu0 0.0
    %133 = vmatpush.msra.mxu0 0.0
    %134 = vmatpush.msra.mxu0 0.0
    %135 = vmatpush.msra.mxu0 0.0
    %136 = vmatpush.msra.mxu0 0.0
    %137 = vmatpush.msra.mxu0 0.0
    %138 = vmatpush.msra.mxu0 0.0
    %139 = vmatpush.msra.mxu0 0.0
    %140 = vmatpush.msra.mxu0 0.0
    %141 = vmatpush.msra.mxu0 0.0
    %142 = vmatpush.msra.mxu0 %v80
    %143 = vmatpush.msra.mxu0 %v78
    %144 = vmatpush.msra.mxu0 %v76
    %145 = vmatpush.msra.mxu0 %v74
    %146 = vmatpush.msra.mxu0 %v72
    %147 = vmatmul.f32.gmra.mxu0 %v84
    %v148 = vpop.f32.mrf.mxu0
    %v149 = vadd.f32 0.0, %v148
    %150 = vmatmul.f32.gmra.mxu0 %v87
    %v151 = vpop.f32.mrf.mxu0
    %v152 = vadd.f32 0.0, %v151
    %153 = vmatmul.f32.gmra.mxu0 %v90
    %v154 = vpop.f32.mrf.mxu0
    %v155 = vadd.f32 0.0, %v154
    %156 = vmatmul.f32.gmra.mxu0 %v93
    %v157 = vpop.f32.mrf.mxu0
    %v158 = vadd.f32 0.0, %v157
    %159 = vmatmul.f32.gmra.mxu0 %v96
    %v160 = vpop.f32.mrf.mxu0
    %v161 = vadd.f32 0.0, %v160
    %162 = vmatmul.f32.gmra.mxu0 %v99
    %v163 = vpop.f32.mrf.mxu0
    %v164 = vadd.f32 0.0, %v163
    %165 = vmatmul.f32.gmra.mxu0 %v102
    %v166 = vpop.f32.mrf.mxu0
    %v167 = vadd.f32 0.0, %v166
    %168 = vmatmul.f32.gmra.mxu0 %v105
    %v169 = vpop.f32.mrf.mxu0
    %v170 = vadd.f32 0.0, %v169
    %171 = vmatmul.f32.gmra.mxu0 %v108
    %v172 = vpop.f32.mrf.mxu0
    %v173 = vadd.f32 0.0, %v172
    %174 = vmatmul.f32.gmra.mxu0 %v111
    %v175 = vpop.f32.mrf.mxu0
    %v176 = vadd.f32 0.0, %v175
    %177 = vmatmul.f32.gmra.mxu0 %v114
    %v178 = vpop.f32.mrf.mxu0
    %v179 = vadd.f32 0.0, %v178
    %180 = vmatmul.f32.gmra.mxu0 %v117
    %v181 = vpop.f32.mrf.mxu0
    %v182 = vadd.f32 0.0, %v181
    %183 = vmatmul.f32.gmra.mxu0 %v120
    %v184 = vpop.f32.mrf.mxu0
    %v185 = vadd.f32 0.0, %v184
    %186 = vmatmul.f32.gmra.mxu0 %v123
    %v187 = vpop.f32.mrf.mxu0
    %v188 = vadd.f32 0.0, %v187
    %189 = vmatmul.f32.gmra.mxu0 %v126
    %v190 = vpop.f32.mrf.mxu0
    %v191 = vadd.f32 0.0, %v190
    %192 = vmatmul.f32.gmra.mxu0 %v129
    %v193 = vpop.f32.mrf.mxu0
    %v194 = vadd.f32 0.0, %v193
    %195 = vdwg.mxu0
    %196 = vmatpush.msra.mxu0 0.0
    %197 = vmatpush.msra.mxu0 0.0
    %198 = vmatpush.msra.mxu0 0.0
    %199 = vmatpush.msra.mxu0 0.0
    %200 = vmatpush.msra.mxu0 0.0
    %201 = vmatpush.msra.mxu0 0.0
    %202 = vmatpush.msra.mxu0 0.0
    %203 = vmatpush.msra.mxu0 0.0
    %204 = vmatpush.msra.mxu0 0.0
    %205 = vmatpush.msra.mxu0 0.0
    %206 = vmatpush.msra.mxu0 0.0
    %207 = vmatpush.msra.mxu0 %v81
    %208 = vmatpush.msra.mxu0 %v79
    %209 = vmatpush.msra.mxu0 %v77
    %210 = vmatpush.msra.mxu0 %v75
    %211 = vmatpush.msra.mxu0 %v73
    %212 = vmatmul.f32.gmra.mxu0 %v84
    %v213 = vpop.f32.mrf.mxu0
    %v214 = vadd.f32 0.0, %v213
    %215 = vmatmul.f32.gmra.mxu0 %v87
    %v216 = vpop.f32.mrf.mxu0
    %v217 = vadd.f32 0.0, %v216
    %218 = vmatmul.f32.gmra.mxu0 %v90
    %v219 = vpop.f32.mrf.mxu0
    %v220 = vadd.f32 0.0, %v219
    %221 = vmatmul.f32.gmra.mxu0 %v93
    %v222 = vpop.f32.mrf.mxu0
    %v223 = vadd.f32 0.0, %v222
    %224 = vmatmul.f32.gmra.mxu0 %v96
    %v225 = vpop.f32.mrf.mxu0
    %v226 = vadd.f32 0.0, %v225
    %227 = vmatmul.f32.gmra.mxu0 %v99
    %v228 = vpop.f32.mrf.mxu0
    %v229 = vadd.f32 0.0, %v228
    %230 = vmatmul.f32.gmra.mxu0 %v102
    %v231 = vpop.f32.mrf.mxu0
    %v232 = vadd.f32 0.0, %v231
    %233 = vmatmul.f32.gmra.mxu0 %v105
    %v234 = vpop.f32.mrf.mxu0
    %v235 = vadd.f32 0.0, %v234
    %236 = vmatmul.f32.gmra.mxu0 %v108
    %v237 = vpop.f32.mrf.mxu0
    %v238 = vadd.f32 0.0, %v237
    %239 = vmatmul.f32.gmra.mxu0 %v111
    %v240 = vpop.f32.mrf.mxu0
    %v241 = vadd.f32 0.0, %v240
    %242 = vmatmul.f32.gmra.mxu0 %v114
    %v243 = vpop.f32.mrf.mxu0
    %v244 = vadd.f32 0.0, %v243
    %245 = vmatmul.f32.gmra.mxu0 %v117
    %v246 = vpop.f32.mrf.mxu0
    %v247 = vadd.f32 0.0, %v246
    %248 = vmatmul.f32.gmra.mxu0 %v120
    %v249 = vpop.f32.mrf.mxu0
    %v250 = vadd.f32 0.0, %v249
    %251 = vmatmul.f32.gmra.mxu0 %v123
    %v252 = vpop.f32.mrf.mxu0
    %v253 = vadd.f32 0.0, %v252
    %254 = vmatmul.f32.gmra.mxu0 %v126
    %v255 = vpop.f32.mrf.mxu0
    %v256 = vadd.f32 0.0, %v255
    %257 = vmatmul.f32.gmra.mxu0 %v129
    %v258 = vpop.f32.mrf.mxu0
    %v259 = vadd.f32 0.0, %v258
    %260 = vdwg.mxu0
    %vm261 = vcmask 195584
    %v263 = vsel %vm261, %v34, 0
    %v266 = vsel %vm261, %v35, 0
    %v269 = vsel %vm261, %v36, 0
    %v272 = vsel %vm261, %v37, 0
    %v275 = vsel %vm261, %v38, 0
    %v278 = vsel %vm261, %v39, 0
    %v281 = vsel %vm261, %v40, 0
    %v284 = vsel %vm261, %v41, 0
    %v287 = vsel %vm261, %v42, 0
    %v290 = vsel %vm261, %v43, 0
    %v293 = vsel %vm261, %v44, 0
    %v296 = vsel %vm261, %v45, 0
    %v299 = vsel %vm261, %v46, 0
    %v302 = vsel %vm261, %v47, 0
    %v305 = vsel %vm261, %v48, 0
    %v308 = vsel %vm261, %v49, 0
    %310 = vmatpush.msra.mxu0 0.0
    %311 = vmatpush.msra.mxu0 0.0
    %312 = vmatpush.msra.mxu0 0.0
    %313 = vmatpush.msra.mxu0 0.0
    %314 = vmatpush.msra.mxu0 0.0
    %315 = vmatpush.msra.mxu0 0.0
    %316 = vmatpush.msra.mxu0 0.0
    %317 = vmatpush.msra.mxu0 0.0
    %318 = vmatpush.msra.mxu0 0.0
    %319 = vmatpush.msra.mxu0 0.0
    %320 = vmatpush.msra.mxu0 0.0
    %321 = vmatpush.msra.mxu0 0.0
    %322 = vmatpush.msra.mxu0 0.0
    %323 = vmatpush.msra.mxu0 %v54
    %324 = vmatpush.msra.mxu0 %v52
    %325 = vmatpush.msra.mxu0 %v50
    %326 = vmatmul.f32.gmra.mxu0 %v263
    %v327 = vpop.f32.mrf.mxu0
    %v328 = vadd.f32 %v149, %v327
    %329 = vmatmul.f32.gmra.mxu0 %v266
    %v330 = vpop.f32.mrf.mxu0
    %v331 = vadd.f32 %v152, %v330
    %332 = vmatmul.f32.gmra.mxu0 %v269
    %v333 = vpop.f32.mrf.mxu0
    %v334 = vadd.f32 %v155, %v333
    %335 = vmatmul.f32.gmra.mxu0 %v272
    %v336 = vpop.f32.mrf.mxu0
    %v337 = vadd.f32 %v158, %v336
    %338 = vmatmul.f32.gmra.mxu0 %v275
    %v339 = vpop.f32.mrf.mxu0
    %v340 = vadd.f32 %v161, %v339
    %341 = vmatmul.f32.gmra.mxu0 %v278
    %v342 = vpop.f32.mrf.mxu0
    %v343 = vadd.f32 %v164, %v342
    %344 = vmatmul.f32.gmra.mxu0 %v281
    %v345 = vpop.f32.mrf.mxu0
    %v346 = vadd.f32 %v167, %v345
    %347 = vmatmul.f32.gmra.mxu0 %v284
    %v348 = vpop.f32.mrf.mxu0
    %v349 = vadd.f32 %v170, %v348
    %350 = vmatmul.f32.gmra.mxu0 %v287
    %v351 = vpop.f32.mrf.mxu0
    %v352 = vadd.f32 %v173, %v351
    %353 = vmatmul.f32.gmra.mxu0 %v290
    %v354 = vpop.f32.mrf.mxu0
    %v355 = vadd.f32 %v176, %v354
    %356 = vmatmul.f32.gmra.mxu0 %v293
    %v357 = vpop.f32.mrf.mxu0
    %v358 = vadd.f32 %v179, %v357
    %359 = vmatmul.f32.gmra.mxu0 %v296
    %v360 = vpop.f32.mrf.mxu0
    %v361 = vadd.f32 %v182, %v360
    %362 = vmatmul.f32.gmra.mxu0 %v299
    %v363 = vpop.f32.mrf.mxu0
    %v364 = vadd.f32 %v185, %v363
    %365 = vmatmul.f32.gmra.mxu0 %v302
    %v366 = vpop.f32.mrf.mxu0
    %v367 = vadd.f32 %v188, %v366
    %368 = vmatmul.f32.gmra.mxu0 %v305
    %v369 = vpop.f32.mrf.mxu0
    %v370 = vadd.f32 %v191, %v369
    %371 = vmatmul.f32.gmra.mxu0 %v308
    %v372 = vpop.f32.mrf.mxu0
    %v373 = vadd.f32 %v194, %v372
    %374 = vdwg.mxu0
    %375 = vmatpush.msra.mxu0 0.0
    %376 = vmatpush.msra.mxu0 0.0
    %377 = vmatpush.msra.mxu0 0.0
    %378 = vmatpush.msra.mxu0 0.0
    %379 = vmatpush.msra.mxu0 0.0
    %380 = vmatpush.msra.mxu0 0.0
    %381 = vmatpush.msra.mxu0 0.0
    %382 = vmatpush.msra.mxu0 0.0
    %383 = vmatpush.msra.mxu0 0.0
    %384 = vmatpush.msra.mxu0 0.0
    %385 = vmatpush.msra.mxu0 0.0
    %386 = vmatpush.msra.mxu0 0.0
    %387 = vmatpush.msra.mxu0 0.0
    %388 = vmatpush.msra.mxu0 %v55
    %389 = vmatpush.msra.mxu0 %v53
    %390 = vmatpush.msra.mxu0 %v51
    %391 = vmatmul.f32.gmra.mxu0 %v263
    %v392 = vpop.f32.mrf.mxu0
    %v393 = vadd.f32 %v214, %v392
    %394 = vmatmul.f32.gmra.mxu0 %v266
    %v395 = vpop.f32.mrf.mxu0
    %v396 = vadd.f32 %v217, %v395
    %397 = vmatmul.f32.gmra.mxu0 %v269
    %v398 = vpop.f32.mrf.mxu0
    %v399 = vadd.f32 %v220, %v398
    %400 = vmatmul.f32.gmra.mxu0 %v272
    %v401 = vpop.f32.mrf.mxu0
    %v402 = vadd.f32 %v223, %v401
    %403 = vmatmul.f32.gmra.mxu0 %v275
    %v404 = vpop.f32.mrf.mxu0
    %v405 = vadd.f32 %v226, %v404
    %406 = vmatmul.f32.gmra.mxu0 %v278
    %v407 = vpop.f32.mrf.mxu0
    %v408 = vadd.f32 %v229, %v407
    %409 = vmatmul.f32.gmra.mxu0 %v281
    %v410 = vpop.f32.mrf.mxu0
    %v411 = vadd.f32 %v232, %v410
    %412 = vmatmul.f32.gmra.mxu0 %v284
    %v413 = vpop.f32.mrf.mxu0
    %v414 = vadd.f32 %v235, %v413
    %415 = vmatmul.f32.gmra.mxu0 %v287
    %v416 = vpop.f32.mrf.mxu0
    %v417 = vadd.f32 %v238, %v416
    %418 = vmatmul.f32.gmra.mxu0 %v290
    %v419 = vpop.f32.mrf.mxu0
    %v420 = vadd.f32 %v241, %v419
    %421 = vmatmul.f32.gmra.mxu0 %v293
    %v422 = vpop.f32.mrf.mxu0
    %v423 = vadd.f32 %v244, %v422
    %424 = vmatmul.f32.gmra.mxu0 %v296
    %v425 = vpop.f32.mrf.mxu0
    %v426 = vadd.f32 %v247, %v425
    %427 = vmatmul.f32.gmra.mxu0 %v299
    %v428 = vpop.f32.mrf.mxu0
    %v429 = vadd.f32 %v250, %v428
    %430 = vmatmul.f32.gmra.mxu0 %v302
    %v431 = vpop.f32.mrf.mxu0
    %v432 = vadd.f32 %v253, %v431
    %433 = vmatmul.f32.gmra.mxu0 %v305
    %v434 = vpop.f32.mrf.mxu0
    %v435 = vadd.f32 %v256, %v434
    %436 = vmatmul.f32.gmra.mxu0 %v308
    %v437 = vpop.f32.mrf.mxu0
    %v438 = vadd.f32 %v259, %v437
    %439 = vdwg.mxu0
    %v440 = vld [vmem:[%s2] sm:$0xff]
    %v441 = vld [vmem:[%s2 + $0x8] sm:$0xff]
    %v442 = vld [vmem:[%s2 + $0x10] sm:$0xff]
    %v443 = vld [vmem:[%s2 + $0x18] sm:$0xff]
    %v444 = vld [vmem:[%s2 + $0x20] sm:$0xff]
    %v445 = vld [vmem:[%s2 + $0x28] sm:$0xff]
    %v446 = vld [vmem:[%s2 + $0x30] sm:$0xff]
    %v447 = vld [vmem:[%s2 + $0x38] sm:$0xff]
    %v448 = vld [vmem:[%s2 + $0x40] sm:$0xff]
    %v449 = vld [vmem:[%s2 + $0x48] sm:$0xff]
    %v450 = vld [vmem:[%s2 + $0x50] sm:$0xff]
    %v451 = vld [vmem:[%s2 + $0x58] sm:$0xff]
    %v452 = vld [vmem:[%s2 + $0x60] sm:$0xff]
    %v453 = vld [vmem:[%s2 + $0x68] sm:$0xff]
    %v454 = vld [vmem:[%s2 + $0x70] sm:$0xff]
    %v455 = vld [vmem:[%s2 + $0x78] sm:$0xff]
    %v456 = vld [vmem:[%s5] sm:$0xff]
    %v457 = vld [vmem:[%s5 + $0x8] sm:$0xff]
    %v458 = vld [vmem:[%s5 + $0x10] sm:$0xff]
    %v459 = vld [vmem:[%s5 + $0x18] sm:$0xff]
    %v460 = vld [vmem:[%s5 + $0x20] sm:$0xff]
    %v461 = vld [vmem:[%s5 + $0x28] sm:$0xff]
    %v462 = vld [vmem:[%s5 + $0x30] sm:$0xff]
    %v463 = vld [vmem:[%s5 + $0x38] sm:$0xff]
    %vm464 = vcmask 261120
    %v466 = vsel %vm464, %v440, 0
    %v469 = vsel %vm464, %v441, 0
    %v472 = vsel %vm464, %v442, 0
    %v475 = vsel %vm464, %v443, 0
    %v478 = vsel %vm464, %v444, 0
    %v481 = vsel %vm464, %v445, 0
    %v484 = vsel %vm464, %v446, 0
    %v487 = vsel %vm464, %v447, 0
    %v490 = vsel %vm464, %v448, 0
    %v493 = vsel %vm464, %v449, 0
    %v496 = vsel %vm464, %v450, 0
    %v499 = vsel %vm464, %v451, 0
    %v502 = vsel %vm464, %v452, 0
    %v505 = vsel %vm464, %v453, 0
    %v508 = vsel %vm464, %v454, 0
    %v511 = vsel %vm464, %v455, 0
    %513 = vmatpush.msra.mxu0 0.0
    %514 = vmatpush.msra.mxu0 0.0
    %515 = vmatpush.msra.mxu0 0.0
    %516 = vmatpush.msra.mxu0 0.0
    %517 = vmatpush.msra.mxu0 0.0
    %518 = vmatpush.msra.mxu0 0.0
    %519 = vmatpush.msra.mxu0 0.0
    %520 = vmatpush.msra.mxu0 0.0
    %521 = vmatpush.msra.mxu0 0.0
    %522 = vmatpush.msra.mxu0 0.0
    %523 = vmatpush.msra.mxu0 0.0
    %524 = vmatpush.msra.mxu0 0.0
    %525 = vmatpush.msra.mxu0 %v462
    %526 = vmatpush.msra.mxu0 %v460
    %527 = vmatpush.msra.mxu0 %v458
    %528 = vmatpush.msra.mxu0 %v456
    %529 = vmatmul.f32.gmra.mxu0 %v466
    %v530 = vpop.f32.mrf.mxu0
    %v531 = vadd.f32 0.0, %v530
    %532 = vmatmul.f32.gmra.mxu0 %v469
    %v533 = vpop.f32.mrf.mxu0
    %v534 = vadd.f32 0.0, %v533
    %535 = vmatmul.f32.gmra.mxu0 %v472
    %v536 = vpop.f32.mrf.mxu0
    %v537 = vadd.f32 0.0, %v536
    %538 = vmatmul.f32.gmra.mxu0 %v475
    %v539 = vpop.f32.mrf.mxu0
    %v540 = vadd.f32 0.0, %v539
    %541 = vmatmul.f32.gmra.mxu0 %v478
    %v542 = vpop.f32.mrf.mxu0
    %v543 = vadd.f32 0.0, %v542
    %544 = vmatmul.f32.gmra.mxu0 %v481
    %v545 = vpop.f32.mrf.mxu0
    %v546 = vadd.f32 0.0, %v545
    %547 = vmatmul.f32.gmra.mxu0 %v484
    %v548 = vpop.f32.mrf.mxu0
    %v549 = vadd.f32 0.0, %v548
    %550 = vmatmul.f32.gmra.mxu0 %v487
    %v551 = vpop.f32.mrf.mxu0
    %v552 = vadd.f32 0.0, %v551
    %553 = vmatmul.f32.gmra.mxu0 %v490
    %v554 = vpop.f32.mrf.mxu0
    %v555 = vadd.f32 0.0, %v554
    %556 = vmatmul.f32.gmra.mxu0 %v493
    %v557 = vpop.f32.mrf.mxu0
    %v558 = vadd.f32 0.0, %v557
    %559 = vmatmul.f32.gmra.mxu0 %v496
    %v560 = vpop.f32.mrf.mxu0
    %v561 = vadd.f32 0.0, %v560
    %562 = vmatmul.f32.gmra.mxu0 %v499
    %v563 = vpop.f32.mrf.mxu0
    %v564 = vadd.f32 0.0, %v563
    %565 = vmatmul.f32.gmra.mxu0 %v502
    %v566 = vpop.f32.mrf.mxu0
    %v567 = vadd.f32 0.0, %v566
    %568 = vmatmul.f32.gmra.mxu0 %v505
    %v569 = vpop.f32.mrf.mxu0
    %v570 = vadd.f32 0.0, %v569
    %571 = vmatmul.f32.gmra.mxu0 %v508
    %v572 = vpop.f32.mrf.mxu0
    %v573 = vadd.f32 0.0, %v572
    %574 = vmatmul.f32.gmra.mxu0 %v511
    %v575 = vpop.f32.mrf.mxu0
    %v576 = vadd.f32 0.0, %v575
    %577 = vdwg.mxu0
    %578 = vmatpush.msra.mxu0 0.0
    %579 = vmatpush.msra.mxu0 0.0
    %580 = vmatpush.msra.mxu0 0.0
    %581 = vmatpush.msra.mxu0 0.0
    %582 = vmatpush.msra.mxu0 0.0
    %583 = vmatpush.msra.mxu0 0.0
    %584 = vmatpush.msra.mxu0 0.0
    %585 = vmatpush.msra.mxu0 0.0
    %586 = vmatpush.msra.mxu0 0.0
    %587 = vmatpush.msra.mxu0 0.0
    %588 = vmatpush.msra.mxu0 0.0
    %589 = vmatpush.msra.mxu0 0.0
    %590 = vmatpush.msra.mxu0 %v463
    %591 = vmatpush.msra.mxu0 %v461
    %592 = vmatpush.msra.mxu0 %v459
    %593 = vmatpush.msra.mxu0 %v457
    %594 = vmatmul.f32.gmra.mxu0 %v466
    %v595 = vpop.f32.mrf.mxu0
    %v596 = vadd.f32 0.0, %v595
    %597 = vmatmul.f32.gmra.mxu0 %v469
    %v598 = vpop.f32.mrf.mxu0
    %v599 = vadd.f32 0.0, %v598
    %600 = vmatmul.f32.gmra.mxu0 %v472
    %v601 = vpop.f32.mrf.mxu0
    %v602 = vadd.f32 0.0, %v601
    %603 = vmatmul.f32.gmra.mxu0 %v475
    %v604 = vpop.f32.mrf.mxu0
    %v605 = vadd.f32 0.0, %v604
    %606 = vmatmul.f32.gmra.mxu0 %v478
    %v607 = vpop.f32.mrf.mxu0
    %v608 = vadd.f32 0.0, %v607
    %609 = vmatmul.f32.gmra.mxu0 %v481
    %v610 = vpop.f32.mrf.mxu0
    %v611 = vadd.f32 0.0, %v610
    %612 = vmatmul.f32.gmra.mxu0 %v484
    %v613 = vpop.f32.mrf.mxu0
    %v614 = vadd.f32 0.0, %v613
    %615 = vmatmul.f32.gmra.mxu0 %v487
    %v616 = vpop.f32.mrf.mxu0
    %v617 = vadd.f32 0.0, %v616
    %618 = vmatmul.f32.gmra.mxu0 %v490
    %v619 = vpop.f32.mrf.mxu0
    %v620 = vadd.f32 0.0, %v619
    %621 = vmatmul.f32.gmra.mxu0 %v493
    %v622 = vpop.f32.mrf.mxu0
    %v623 = vadd.f32 0.0, %v622
    %624 = vmatmul.f32.gmra.mxu0 %v496
    %v625 = vpop.f32.mrf.mxu0
    %v626 = vadd.f32 0.0, %v625
    %627 = vmatmul.f32.gmra.mxu0 %v499
    %v628 = vpop.f32.mrf.mxu0
    %v629 = vadd.f32 0.0, %v628
    %630 = vmatmul.f32.gmra.mxu0 %v502
    %v631 = vpop.f32.mrf.mxu0
    %v632 = vadd.f32 0.0, %v631
    %633 = vmatmul.f32.gmra.mxu0 %v505
    %v634 = vpop.f32.mrf.mxu0
    %v635 = vadd.f32 0.0, %v634
    %636 = vmatmul.f32.gmra.mxu0 %v508
    %v637 = vpop.f32.mrf.mxu0
    %v638 = vadd.f32 0.0, %v637
    %639 = vmatmul.f32.gmra.mxu0 %v511
    %v640 = vpop.f32.mrf.mxu0
    %v641 = vadd.f32 0.0, %v640
    %642 = vdwg.mxu0
    %v643 = vadd.f32 %v328, %v531
    %v644 = vadd.f32 %v393, %v596
    %v645 = vadd.f32 %v331, %v534
    %v646 = vadd.f32 %v396, %v599
    %v647 = vadd.f32 %v334, %v537
    %v648 = vadd.f32 %v399, %v602
    %v649 = vadd.f32 %v337, %v540
    %v650 = vadd.f32 %v402, %v605
    %v651 = vadd.f32 %v340, %v543
    %v652 = vadd.f32 %v405, %v608
    %v653 = vadd.f32 %v343, %v546
    %v654 = vadd.f32 %v408, %v611
    %v655 = vadd.f32 %v346, %v549
    %v656 = vadd.f32 %v411, %v614
    %v657 = vadd.f32 %v349, %v552
    %v658 = vadd.f32 %v414, %v617
    %v659 = vadd.f32 %v352, %v555
    %v660 = vadd.f32 %v417, %v620
    %v661 = vadd.f32 %v355, %v558
    %v662 = vadd.f32 %v420, %v623
    %v663 = vadd.f32 %v358, %v561
    %v664 = vadd.f32 %v423, %v626
    %v665 = vadd.f32 %v361, %v564
    %v666 = vadd.f32 %v426, %v629
    %v667 = vadd.f32 %v364, %v567
    %v668 = vadd.f32 %v429, %v632
    %v669 = vadd.f32 %v367, %v570
    %v670 = vadd.f32 %v432, %v635
    %v671 = vadd.f32 %v370, %v573
    %v672 = vadd.f32 %v435, %v638
    %v673 = vadd.f32 %v373, %v576
    %v674 = vadd.f32 %v438, %v641
    %v675 = vld [vmem:[%s6] sm:$0x3]
    %v677 = vperm.slane %v675, 0
    %v678 = vperm.slane %v675, 1
    %v681 = vadd.f32 %v643, %v677
    %v682 = vadd.f32 %v644, %v678
    %v683 = vadd.f32 %v645, %v677
    %v684 = vadd.f32 %v646, %v678
    %v685 = vadd.f32 %v647, %v677
    %v686 = vadd.f32 %v648, %v678
    %v687 = vadd.f32 %v649, %v677
    %v688 = vadd.f32 %v650, %v678
    %v689 = vadd.f32 %v651, %v677
    %v690 = vadd.f32 %v652, %v678
    %v691 = vadd.f32 %v653, %v677
    %v692 = vadd.f32 %v654, %v678
    %v693 = vadd.f32 %v655, %v677
    %v694 = vadd.f32 %v656, %v678
    %v695 = vadd.f32 %v657, %v677
    %v696 = vadd.f32 %v658, %v678
    %v697 = vadd.f32 %v659, %v677
    %v698 = vadd.f32 %v660, %v678
    %v699 = vadd.f32 %v661, %v677
    %v700 = vadd.f32 %v662, %v678
    %v701 = vadd.f32 %v663, %v677
    %v702 = vadd.f32 %v664, %v678
    %v703 = vadd.f32 %v665, %v677
    %v704 = vadd.f32 %v666, %v678
    %v705 = vadd.f32 %v667, %v677
    %v706 = vadd.f32 %v668, %v678
    %v707 = vadd.f32 %v669, %v677
    %v708 = vadd.f32 %v670, %v678
    %v709 = vadd.f32 %v671, %v677
    %v710 = vadd.f32 %v672, %v678
    %v711 = vadd.f32 %v673, %v677
    %v712 = vadd.f32 %v674, %v678
    %v713 = vmax.f32 %v681, 0.0
    %v714 = vmax.f32 %v682, 0.0
    %v715 = vmax.f32 %v683, 0.0
    %v716 = vmax.f32 %v684, 0.0
    %v717 = vmax.f32 %v685, 0.0
    %v718 = vmax.f32 %v686, 0.0
    %v719 = vmax.f32 %v687, 0.0
    %v720 = vmax.f32 %v688, 0.0
    %v721 = vmax.f32 %v689, 0.0
    %v722 = vmax.f32 %v690, 0.0
    %v723 = vmax.f32 %v691, 0.0
    %v724 = vmax.f32 %v692, 0.0
    %v725 = vmax.f32 %v693, 0.0
    %v726 = vmax.f32 %v694, 0.0
    %v727 = vmax.f32 %v695, 0.0
    %v728 = vmax.f32 %v696, 0.0
    %v729 = vmax.f32 %v697, 0.0
    %v730 = vmax.f32 %v698, 0.0
    %v731 = vmax.f32 %v699, 0.0
    %v732 = vmax.f32 %v700, 0.0
    %v733 = vmax.f32 %v701, 0.0
    %v734 = vmax.f32 %v702, 0.0
    %v735 = vmax.f32 %v703, 0.0
    %v736 = vmax.f32 %v704, 0.0
    %v737 = vmax.f32 %v705, 0.0
    %v738 = vmax.f32 %v706, 0.0
    %v739 = vmax.f32 %v707, 0.0
    %v740 = vmax.f32 %v708, 0.0
    %v741 = vmax.f32 %v709, 0.0
    %v742 = vmax.f32 %v710, 0.0
    %v743 = vmax.f32 %v711, 0.0
    %v744 = vmax.f32 %v712, 0.0
    %v745 = vld [vmem:[%s7] sm:$0x3]
    %s746 = sld [smem:[#allocation2]]
    %v747 = vstv %s746
    %v749 = vperm.slane %v745, 0
    %v750 = vperm.slane %v745, 1
    %753 = vmatpush.xpose.msra.mxu0 %v743
    %754 = vmatpush.xpose.msra.mxu0 %v741
    %755 = vmatpush.xpose.msra.mxu0 %v739
    %756 = vmatpush.xpose.msra.mxu0 %v737
    %757 = vmatpush.xpose.msra.mxu0 %v735
    %758 = vmatpush.xpose.msra.mxu0 %v733
    %759 = vmatpush.xpose.msra.mxu0 %v731
    %760 = vmatpush.xpose.msra.mxu0 %v729
    %761 = vmatpush.xpose.msra.mxu0 %v727
    %762 = vmatpush.xpose.msra.mxu0 %v725
    %763 = vmatpush.xpose.msra.mxu0 %v723
    %764 = vmatpush.xpose.msra.mxu0 %v721
    %765 = vmatpush.xpose.msra.mxu0 %v719
    %766 = vmatpush.xpose.msra.mxu0 %v717
    %767 = vmatpush.xpose.msra.mxu0 %v715
    %768 = vmatpush.xpose.msra.mxu0 %v713
    %769 = vmatmul.f32.gmra.mxu0 %v749
    %v770 = vpop.f32.mrf.mxu0
    %v771 = vadd.f32 %v747, %v770
    %772 = vdwg.mxu0
    %773 = vmatpush.xpose.msra.mxu0 %v744
    %774 = vmatpush.xpose.msra.mxu0 %v742
    %775 = vmatpush.xpose.msra.mxu0 %v740
    %776 = vmatpush.xpose.msra.mxu0 %v738
    %777 = vmatpush.xpose.msra.mxu0 %v736
    %778 = vmatpush.xpose.msra.mxu0 %v734
    %779 = vmatpush.xpose.msra.mxu0 %v732
    %780 = vmatpush.xpose.msra.mxu0 %v730
    %781 = vmatpush.xpose.msra.mxu0 %v728
    %782 = vmatpush.xpose.msra.mxu0 %v726
    %783 = vmatpush.xpose.msra.mxu0 %v724
    %784 = vmatpush.xpose.msra.mxu0 %v722
    %785 = vmatpush.xpose.msra.mxu0 %v720
    %786 = vmatpush.xpose.msra.mxu0 %v718
    %787 = vmatpush.xpose.msra.mxu0 %v716
    %788 = vmatpush.xpose.msra.mxu0 %v714
    %789 = vmatmul.f32.gmra.mxu0 %v750
    %v790 = vpop.f32.mrf.mxu0
    %v791 = vadd.f32 %v771, %v790
    %792 = vdwg.mxu0
    %v793 = vtanh.pop %v791
    %794 = vst [vmem:[#allocation3] sm:$0x1] %v793
    // Predicated region
    $region38: #{tpu_custom_call.1} parent=1 // pred_check
      _
    $region39: #{tpu_custom_call.1} parent=1 // pred_check_branch
      %796 = sbr.rel (0) target = $region41
    $region40: #{tpu_custom_call.1} parent=1 // pred_region
      %798 = vsyncadd [#allocation4], 0
      %s800 = sshll.u32 [#allocation3], 4
      %s801 = int_to_ptr.vmem [resolvable:$true] %s800
      %s802 = sshll.u32 %s9, 4
      %s803 = int_to_ptr.hbm [resolvable:$true] %s802
      %805 = dma.vmem_to_hbm [thread:$0]  %s801, 16, %s803, [#allocation4]
    $region41: #{tpu_custom_call.1} parent=1 // pred_fallthru
      _
    // Predicated region
    $region42: #{tpu_custom_call.1} parent=1 // pred_check
      _
    $region43: #{tpu_custom_call.1} parent=1 // pred_check_branch
      %807 = sbr.rel (0) target = $region45
    $region44: #{tpu_custom_call.1} parent=1 // pred_region
      %809 = dma.done [#allocation4], 16
    $region45: #{tpu_custom_call.1} parent=1 // pred_fallthru
      _
    %810 = vsyncpa [#allocation4], 1

</llo_original>
